<compile_context>
chip_gen: v7x
topology: tpu7x:2x2x1
jax: 0.10.0
libtpu: 0.0.40
codegen_flags: <defaults>
</compile_context>

<pallas_src>
import functools
import math

import jax
import jax.numpy as jnp
from jax import lax
from jax.experimental import pallas as pl
from jax.experimental.pallas import tpu as pltpu


# ----------------------------- tiling / compiler-param helpers -----------------------------

# Tile targets for the demo config.  At realistic MICRO item counts raise these toward
# the per-generation VMEM budget (v5e/v6e ~1k-wide bf16 adjacency tiles; v7x has only
# 64 MiB VMEM -> ~512-wide tiles with double-buffering).
_ROW_TILE = 128   # second-to-last (sublane) dim: multiple of 8
_K_TILE = 128     # last (lane) dim: multiple of 128


def _row_tile(n, target=_ROW_TILE):
    for t in range(min(n, target), 7, -1):
        if n % t == 0 and t % 8 == 0:
            return t
    return n          # full dim is always a legal block


def _k_tile(n, target=_K_TILE):
    for t in range(min(n, target), 127, -1):
        if n % t == 0 and t % 128 == 0:
            return t
    return n          # full dim is always a legal block


def _nbytes(shape, dtype):
    return math.prod(shape) * jnp.dtype(dtype).itemsize


def _compiler_params(dimension_semantics, block_bytes, scratch_bytes=0):
    # double-buffered pipeline blocks (+margin) + scratch, clamped v7x-safe (< 64 MiB).
    limit = int(min(max(4 * block_bytes + scratch_bytes + (1 << 20), 8 << 20), 56 << 20))
    return pltpu.CompilerParams(dimension_semantics=dimension_semantics,
                                vmem_limit_bytes=limit)


# ----------------------------- Pallas kernels -----------------------------

def _rownorm_kernel(x_ref, o_ref):
    # F.normalize(x, p=2, dim=1) on a row tile (used for the frozen raw features at init)
    x = x_ref[...]
    inv = lax.rsqrt(jnp.maximum(jnp.sum(x * x, axis=-1, keepdims=True), 1e-24))
    o_ref[...] = x * inv


def _trs_norm_kernel(img_raw_ref, w_img_ref, b_img_ref,
                     txt_raw_ref, w_txt_ref, b_txt_ref,
                     img_out_ref, txt_out_ref):
    # image_trs / text_trs Linear fused with the row-normalization that build_sim needs.
    fi = (jnp.dot(img_raw_ref[...], w_img_ref[...], preferred_element_type=jnp.float32)
          + b_img_ref[...])
    ft = (jnp.dot(txt_raw_ref[...], w_txt_ref[...], preferred_element_type=jnp.float32)
          + b_txt_ref[...])
    img_out_ref[...] = fi * lax.rsqrt(
        jnp.maximum(jnp.sum(fi * fi, axis=-1, keepdims=True), 1e-24))
    txt_out_ref[...] = ft * lax.rsqrt(
        jnp.maximum(jnp.sum(ft * ft, axis=-1, keepdims=True), 1e-24))


def _sim_nt_kernel(a_ref, b_ref, sim_ref):
    # One (ti, tj) output tile of fnorm @ fnorm.T via an NT dot_general (no f.T in HBM).
    # TODO(synk): precision=lax.Precision.HIGHEST if kNN topology must match the f32 ref.
    s = lax.dot_general(a_ref[...], b_ref[...],
                        dimension_numbers=(((1,), (1,)), ((), ())),
                        preferred_element_type=jnp.float32)
    sim_ref[...] = s.astype(sim_ref.dtype)     # bf16 writeback (stage is store-bound)


def _spmm_kernel(a_ref, b_ref, o_ref, acc_ref):
    # Tiled (bf16 adjacency) @ (f32 embeddings) with f32 scratch accumulation.
    @pl.when(pl.program_id(1) == 0)
    def _():
        acc_ref[...] = jnp.zeros_like(acc_ref)

    acc_ref[...] += jnp.dot(a_ref[...], b_ref[...].astype(jnp.bfloat16),
                            preferred_element_type=jnp.float32)

    @pl.when(pl.program_id(1) == pl.num_programs(1) - 1)
    def _():
        o_ref[...] = acc_ref[...].astype(o_ref.dtype)


def _prop_fuse_kernel(img_adj_ref, txt_adj_ref, img_rhs_ref, txt_rhs_ref,
                      w1_ref, b1_ref, w2_row_ref,
                      img_e_ref, txt_e_ref, h_ref, hn_ref,
                      acc_img_ref, acc_txt_ref):
    # Final item-graph propagation layer for BOTH modalities (shared K sweep) fused with
    # the attention query (per-modality W1/tanh/w2-row), 2-way softmax, h and normalize(h).
    k = pl.program_id(1)

    @pl.when(k == 0)
    def _():
        acc_img_ref[...] = jnp.zeros_like(acc_img_ref)
        acc_txt_ref[...] = jnp.zeros_like(acc_txt_ref)

    rhs_i = img_rhs_ref[...].astype(jnp.bfloat16)
    rhs_t = txt_rhs_ref[...].astype(jnp.bfloat16)
    acc_img_ref[...] += jnp.dot(img_adj_ref[...], rhs_i, preferred_element_type=jnp.float32)
    acc_txt_ref[...] += jnp.dot(txt_adj_ref[...], rhs_t, preferred_element_type=jnp.float32)

    @pl.when(k == pl.num_programs(1) - 1)
    def _():
        img_e = acc_img_ref[...]
        txt_e = acc_txt_ref[...]
        img_e_ref[...] = img_e
        txt_e_ref[...] = txt_e

        w1 = w1_ref[...]
        b1 = b1_ref[...]
        w2 = w2_row_ref[...]
        # query(): Linear(d,d)+Tanh, then Linear(d,1,bias=False) as VPU mult + lane reduce.
        q_img = jnp.sum(
            jnp.tanh(jnp.dot(img_e, w1, preferred_element_type=jnp.float32) + b1) * w2,
            axis=-1, keepdims=True)
        q_txt = jnp.sum(
            jnp.tanh(jnp.dot(txt_e, w1, preferred_element_type=jnp.float32) + b1) * w2,
            axis=-1, keepdims=True)
        m = jnp.maximum(q_img, q_txt)
        e_img = jnp.exp(q_img - m)
        e_txt = jnp.exp(q_txt - m)
        inv_den = pl.reciprocal(e_img + e_txt, approx=True)
        h = (e_img * inv_den) * img_e + (e_txt * inv_den) * txt_e
        h_ref[...] = h
        # F.normalize(h, p=2, dim=1) fused here so i_g = i_g_base + hn is a cheap add later.
        hn_ref[...] = h * lax.rsqrt(jnp.maximum(jnp.sum(h * h, axis=-1, keepdims=True),
                                                1e-24))


# ----------------------------- pallas_call wrappers -----------------------------

def rownorm(x):
    n, f = x.shape
    tm = _row_tile(n)
    blk = 2 * _nbytes((tm, f), jnp.float32)
    return pl.pallas_call(
        _rownorm_kernel,
        out_shape=jax.ShapeDtypeStruct((n, f), jnp.float32),
        grid=(n // tm,),
        in_specs=[pl.BlockSpec((tm, f), lambda i: (i, 0))],
        out_specs=pl.BlockSpec((tm, f), lambda i: (i, 0)),
        compiler_params=_compiler_params(("parallel",), blk),
    )(x)


def transform_and_normalize(img_raw, w_img, b_img, txt_raw, w_txt, b_txt):
    n, fi = img_raw.shape
    ft = txt_raw.shape[1]
    d = w_img.shape[1]
    tm = _row_tile(n)
    blk = (_nbytes((tm, fi), jnp.float32) + _nbytes((fi, d), jnp.float32)
           + _nbytes((tm, ft), jnp.float32) + _nbytes((ft, d), jnp.float32)
           + 2 * _nbytes((1, d), jnp.float32) + 2 * _nbytes((tm, d), jnp.float32))
    return pl.pallas_call(
        _trs_norm_kernel,
        out_shape=(jax.ShapeDtypeStruct((n, d), jnp.float32),
                   jax.ShapeDtypeStruct((n, d), jnp.float32)),
        grid=(n // tm,),
        in_specs=[
            pl.BlockSpec((tm, fi), lambda i: (i, 0)),
            pl.BlockSpec((fi, d), lambda i: (0, 0)),
            pl.BlockSpec((1, d), lambda i: (0, 0)),
            pl.BlockSpec((tm, ft), lambda i: (i, 0)),
            pl.BlockSpec((ft, d), lambda i: (0, 0)),
            pl.BlockSpec((1, d), lambda i: (0, 0)),
        ],
        out_specs=(pl.BlockSpec((tm, d), lambda i: (i, 0)),
                   pl.BlockSpec((tm, d), lambda i: (i, 0))),
        compiler_params=_compiler_params(("parallel",), blk),
    )(img_raw, w_img, b_img, txt_raw, w_txt, b_txt)


def cosine_sim_bf16(fnorm):
    """build_sim: row-normalized features -> bf16 cosine-similarity matrix (tiled NT matmul)."""
    n, d = fnorm.shape
    ti = _row_tile(n)
    tj = _k_tile(n)
    blk = (2 * _nbytes((ti, d), jnp.float32) + _nbytes((ti, tj), jnp.bfloat16))
    return pl.pallas_call(
        _sim_nt_kernel,
        out_shape=jax.ShapeDtypeStruct((n, n), jnp.bfloat16),
        grid=(n // ti, n // tj),
        in_specs=[pl.BlockSpec((ti, d), lambda i, j: (i, 0)),
                  pl.BlockSpec((tj, d), lambda i, j: (j, 0))],
        out_specs=pl.BlockSpec((ti, tj), lambda i, j: (i, j)),
        compiler_params=_compiler_params(("parallel", "parallel"), blk),
    )(fnorm, fnorm)


def spmm(adj_bf16, x):
    """Tiled (bf16 adjacency)[M,K] @ (f32 embeddings)[K,d] with f32 scratch accumulator."""
    m, kdim = adj_bf16.shape
    d = x.shape[1]
    tm = _row_tile(m)
    tk = _k_tile(kdim)
    blk = (_nbytes((tm, tk), jnp.bfloat16) + _nbytes((tk, d), jnp.float32)
           + _nbytes((tm, d), jnp.float32))
    scratch = _nbytes((tm, d), jnp.float32)
    return pl.pallas_call(
        _spmm_kernel,
        out_shape=jax.ShapeDtypeStruct((m, d), jnp.float32),
        grid=(m // tm, kdim // tk),
        in_specs=[pl.BlockSpec((tm, tk), lambda i, k: (i, k)),
                  pl.BlockSpec((tk, d), lambda i, k: (k, 0))],
        out_specs=pl.BlockSpec((tm, d), lambda i, k: (i, 0)),
        scratch_shapes=[pltpu.VMEM((tm, d), jnp.float32)],
        compiler_params=_compiler_params(("parallel", "arbitrary"), blk, scratch),
    )(adj_bf16, x)


def item_propagate_and_fuse(image_adj, text_adj, img_rhs, txt_rhs, q_w1, q_b1, q_w2_row):
    n = image_adj.shape[0]
    d = img_rhs.shape[1]
    tm = _row_tile(n)
    tk = _k_tile(n)
    blk = (2 * _nbytes((tm, tk), jnp.bfloat16) + 2 * _nbytes((tk, d), jnp.float32)
           + _nbytes((d, d), jnp.float32) + 2 * _nbytes((1, d), jnp.float32)
           + 4 * _nbytes((tm, d), jnp.float32))
    scratch = 2 * _nbytes((tm, d), jnp.float32)
    out_sds = jax.ShapeDtypeStruct((n, d), jnp.float32)
    out_spec = pl.BlockSpec((tm, d), lambda i, k: (i, 0))
    return pl.pallas_call(
        _prop_fuse_kernel,
        out_shape=(out_sds, out_sds, out_sds, out_sds),   # img_e, txt_e, h, normalize(h)
        grid=(n // tm, n // tk),
        in_specs=[
            pl.BlockSpec((tm, tk), lambda i, k: (i, k)),   # image_adj tile (bf16)
            pl.BlockSpec((tm, tk), lambda i, k: (i, k)),   # text_adj tile (bf16)
            pl.BlockSpec((tk, d), lambda i, k: (k, 0)),    # image RHS K-tile
            pl.BlockSpec((tk, d), lambda i, k: (k, 0)),    # text RHS K-tile
            pl.BlockSpec((d, d), lambda i, k: (0, 0)),     # query W1
            pl.BlockSpec((1, d), lambda i, k: (0, 0)),     # query b1
            pl.BlockSpec((1, d), lambda i, k: (0, 0)),     # query W2 row
        ],
        out_specs=(out_spec, out_spec, out_spec, out_spec),
        scratch_shapes=[pltpu.VMEM((tm, d), jnp.float32),
                        pltpu.VMEM((tm, d), jnp.float32)],
        compiler_params=_compiler_params(("parallel", "arbitrary"), blk, scratch),
    )(image_adj, text_adj, img_rhs, txt_rhs, q_w1, q_b1, q_w2_row)


# ----------------------------- graph construction glue (plain JAX) -----------------------------
# TODO(synk): build_knn_normalized_graph is external to Models.py; a faithful dense
# re-implementation (row top-k + symmetric normalization) is used.  jax.lax.top_k has no
# clean Pallas equivalent, so this stays in XLA.

def build_knn_normalized_graph(sim, topk):
    n = sim.shape[0]
    _, idx = jax.lax.top_k(sim, topk)               # bf16 sim is fine for neighbor selection
    sim = sim.astype(jnp.float32)
    mask = jnp.zeros_like(sim).at[jnp.arange(n)[:, None], idx].set(1.0)
    a = sim * mask
    deg = jnp.sum(a, axis=1)
    dinv = jnp.where(deg > 0, 1.0 / jnp.sqrt(deg), 0.0)
    return a * dinv[:, None] * dinv[None, :]


# ----------------------------- parameter init -----------------------------

def xavier_uniform(key, shape):
    fan_in, fan_out = shape[0], shape[1]
    bound = jnp.sqrt(6.0 / (fan_in + fan_out))
    return jax.random.uniform(key, shape, jnp.float32, -bound, bound)


def init_params(key, n_users, n_items, d, img_dim, txt_dim, topk):
    ks = jax.random.split(key, 8)
    p = {}
    p["user_emb"] = xavier_uniform(ks[0], (n_users, d))
    p["item_emb"] = xavier_uniform(ks[1], (n_items, d))
    p["image_feats"] = jax.random.normal(ks[2], (n_items, img_dim), jnp.float32)
    p["text_feats"] = jax.random.normal(ks[3], (n_items, txt_dim), jnp.float32)
    # nn.Linear(*, d): W stored as [in, out], bias as [1, out]
    p["img_trs_w"] = xavier_uniform(ks[4], (img_dim, d))
    p["img_trs_b"] = jnp.zeros((1, d), jnp.float32)
    p["txt_trs_w"] = xavier_uniform(ks[5], (txt_dim, d))
    p["txt_trs_b"] = jnp.zeros((1, d), jnp.float32)
    # query: Linear(d, d) + Tanh + Linear(d, 1, bias=False); W2 kept as a [1, d] row.
    p["q_w1"] = xavier_uniform(ks[6], (d, d))
    p["q_b1"] = jnp.zeros((1, d), jnp.float32)
    p["q_w2_row"] = xavier_uniform(ks[7], (d, 1)).reshape(1, d)

    # frozen-feature modality adjacencies built in __init__ (Pallas sim kernels + kNN glue)
    p["image_original_adj"] = build_knn_normalized_graph(
        cosine_sim_bf16(rownorm(p["image_feats"])), topk)
    p["text_original_adj"] = build_knn_normalized_graph(
        cosine_sim_bf16(rownorm(p["text_feats"])), topk)
    return p


def make_ui_adj(key, n_users, n_items):
    # symmetric-normalized bipartite user-item adjacency (the `adj` forward input)
    r = (jax.random.uniform(key, (n_users, n_items)) < 0.3).astype(jnp.float32)
    n = n_users + n_items
    a = jnp.zeros((n, n), jnp.float32)
    a = a.at[:n_users, n_users:].set(r)
    a = a.at[n_users:, :n_users].set(r.T)
    deg = jnp.sum(a, axis=1)
    dinv = jnp.where(deg > 0, 1.0 / jnp.sqrt(deg), 0.0)
    return a * dinv[:, None] * dinv[None, :]


# ----------------------------- MICRO forward (cf_model = 'lightgcn') -----------------------------

def micro_forward(params, adj, *, n_users, n_items, d,
                  layers=1, n_ui_layers=2, topk=4, lambda_coeff=0.5,
                  build_item_graph=True):
    if build_item_graph:
        # fused Linear transform + F.normalize (tiled over item rows), then tiled NT sim (bf16)
        img_fn, txt_fn = transform_and_normalize(
            params["image_feats"], params["img_trs_w"], params["img_trs_b"],
            params["text_feats"], params["txt_trs_w"], params["txt_trs_b"])
        sim_img = cosine_sim_bf16(img_fn)
        sim_txt = cosine_sim_bf16(txt_fn)
        image_adj = ((1.0 - lambda_coeff) * build_knn_normalized_graph(sim_img, topk)
                     + lambda_coeff * params["image_original_adj"]).astype(jnp.bfloat16)
        text_adj = ((1.0 - lambda_coeff) * build_knn_normalized_graph(sim_txt, topk)
                    + lambda_coeff * params["text_original_adj"]).astype(jnp.bfloat16)
    else:
        # TODO(synk): reference reuses self.image_adj/self.text_adj cached from the last
        # build_item_graph=True forward (module state); fall back to the original adj.
        image_adj = params["image_original_adj"].astype(jnp.bfloat16)
        text_adj = params["text_original_adj"].astype(jnp.bfloat16)

    item_emb = params["item_emb"]

    # item-item graph propagation: layers-1 plain tiled spmm steps per modality, then the
    # final layer fused with the attention query / 2-way softmax / h / normalize(h).
    img_rhs = item_emb
    txt_rhs = item_emb
    for _ in range(layers - 1):
        img_rhs = spmm(image_adj, img_rhs)
        txt_rhs = spmm(text_adj, txt_rhs)
    img_e, txt_e, h, hn = item_propagate_and_fuse(
        image_adj, text_adj, img_rhs, txt_rhs,
        params["q_w1"], params["q_b1"], params["q_w2_row"])

    # LightGCN user-item propagation (tiled spmm per layer over a bf16 adjacency stream)
    ego = jnp.concatenate([params["user_emb"], item_emb], axis=0)
    ui_adj = adj.astype(jnp.bfloat16)
    acc = ego
    e = ego
    for _ in range(n_ui_layers):
        e = spmm(ui_adj, e)
        acc = acc + e
    all_mean = acc * (1.0 / float(n_ui_layers + 1))   # tiny [M,d] elementwise, left to XLA
    u_g = all_mean[:n_users]
    i_g = all_mean[n_users:] + hn                     # i_g_base + F.normalize(h, p=2, dim=1)
    return u_g, i_g, img_e, txt_e, h


# ----------------------------- main -----------------------------

if __name__ == "__main__":
    n_users, n_items = 128, 256      # multiples of the tile sizes -> aligned user/item split
    embed_dim = 128                  # lane-dense embedding dim (multiple of 128)
    img_dim, txt_dim = 64, 48
    topk, layers, n_ui_layers, lambda_coeff = 4, 1, 2, 0.5

    key = jax.random.PRNGKey(0)
    k_params, k_adj = jax.random.split(key)
    params = init_params(k_params, n_users, n_items, embed_dim, img_dim, txt_dim, topk)
    adj = make_ui_adj(k_adj, n_users, n_items)

    fwd = jax.jit(functools.partial(
        micro_forward,
        n_users=n_users, n_items=n_items, d=embed_dim,
        layers=layers, n_ui_layers=n_ui_layers,
        topk=topk, lambda_coeff=lambda_coeff,
        build_item_graph=True))

    outs = jax.block_until_ready(fwd(params, adj))

    u_g, i_g, img_e, txt_e, h = outs
    assert u_g.shape == (n_users, embed_dim)
    assert i_g.shape == (n_items, embed_dim)
    assert img_e.shape == (n_items, embed_dim)
    assert txt_e.shape == (n_items, embed_dim)
    assert h.shape == (n_items, embed_dim)
    assert all(bool(jnp.all(jnp.isfinite(o))) for o in outs)
    print("KERNEL_OK")
</pallas_src>

<mosaic_0001>
module attributes {stable_mosaic.version = 11 : i64} {
  func.func @_rownorm_kernel(%arg0: i32, %arg1: memref<128x64xf32, #tpu.memory_space<vmem>>, %arg2: memref<128x64xf32, #tpu.memory_space<vmem>>) attributes {dimension_semantics = [#tpu.dimension_semantics<parallel>], iteration_bounds = array<i64: 2>, scalar_prefetch = 0 : i64, scratch_operands = 0 : i64, tpu.core_type = #tpu.core_type<tc>, window_params = [{transform_indices = @transform_0, window_bounds = array<i64: 128, 64>}, {transform_indices = @transform_1, window_bounds = array<i64: 128, 64>}]} {
    %c0 = arith.constant 0 : index
    %c0_0 = arith.constant 0 : index
    %0 = vector.load %arg1[%c0, %c0_0] : memref<128x64xf32, #tpu.memory_space<vmem>>, vector<128x64xf32>
    %1 = arith.mulf %0, %0 : vector<128x64xf32>
    %cst = arith.constant dense<0.000000e+00> : vector<128xf32>
    %2 = vector.multi_reduction <add>, %1, %cst [1] : vector<128x64xf32> to vector<128xf32>
    %3 = vector.shape_cast %2 : vector<128xf32> to vector<128x1xf32>
    %cst_1 = arith.constant 1.000000e-24 : f32
    %4 = vector.broadcast %cst_1 : f32 to vector<128x1xf32>
    %5 = arith.maximumf %3, %4 : vector<128x1xf32>
    %6 = math.rsqrt %5 : vector<128x1xf32>
    %7 = vector.broadcast %6 : vector<128x1xf32> to vector<128x64xf32>
    %8 = arith.mulf %0, %7 : vector<128x64xf32>
    %c0_2 = arith.constant 0 : index
    %c0_3 = arith.constant 0 : index
    %9 = vector.load %arg2[%c0_2, %c0_3] : memref<128x64xf32, #tpu.memory_space<vmem>>, vector<128x64xf32>
    tpu.vector_store %arg2[%c0_2, %c0_3], %8 {strides = array<i32>} : memref<128x64xf32, #tpu.memory_space<vmem>>, vector<128x64xf32>,
    return
  }
  func.func @transform_0(%arg0: i32) -> (i32, i32) {
    %c0_i32 = arith.constant 0 : i32
    %c0_i32_0 = arith.constant 0 : i32
    return %arg0, %c0_i32 : i32, i32
  }
  func.func @transform_1(%arg0: i32) -> (i32, i32) {
    %c0_i32 = arith.constant 0 : i32
    %c0_i32_0 = arith.constant 0 : i32
    return %arg0, %c0_i32 : i32, i32
  }
}

</mosaic_0001>

<llo_original>
// kernel: tpu_custom_call.1
$region0: #{tpu_custom_call.1}
  #allocation0 [shape = 'u32[]', space=smem, size = 0x4, offset = 0x4, fixed_abs, tag = 'smem constant byte address 0x4 - core index']
  #allocation1 [shape = 'u32[144,128]{1,0:T(1,128)}', space=vmem, size = 0x12000, scoped, tag = 'internal scratch']
  %s0 = inlined_call_operand.vmem [shape: f32[256,64], index: 0, kind: input, shape index: {}]
  %s1 = inlined_call_operand.vmem [shape: f32[256,64], index: 1, kind: output, shape index: {}]
  %s2 = sld [smem:[#allocation0]]
  $region37: #{tpu_custom_call.1} parent=0
    _
  %s4 = ssub.s32 1, %s2
  %s5 = scalar_select 0, %s4, %s2
  loop: start=0, step=1, limit=4
  $region2: #{tpu_custom_call.1} parent=0 // loop_pre_header
    _
  $region3: #{tpu_custom_call.1} parent=0 // loop_header
    %s7 = sphi 0, %s11
    %p8 = scmp.ge.s32.totalorder %s7, 4
    %s17 = sphi 0, %s19
    %s20 = sphi 0, %s17
    %s21 = sphi 0, %s20
    %s37 = sphi 0, %s21
    %s43 = sphi 0, %s45
    %s46 = sphi 0, %s43
    %s47 = sphi 0, %s46
    %s63 = sphi 0, %s47
  $region4: #{tpu_custom_call.1} parent=0 // loop_header_branch
    %10 = sbr.rel (%p8) target = $region8
  $region5: #{tpu_custom_call.1} parent=0 // loop_body
    %s12 = ssub.s32 %s7, 1
    %s13 = ssub.s32 %s7, 2
    %s14 = sadd.s32 %s7, 1
    %s15 = ssub.s32 %s7, %s14
    %p16 = scmp.eq.s32.totalorder %s15, 0
    %s18 = sadd.s32 %s17, 1
    %s19 = scalar_select %p16, %s17, %s18
    %p22 = pneg %p16
    %p23 = scmp.eq.s32.totalorder %s7, 1
    %p24 = por %p22, %p23
    %p25 = scmp.ne.s32.totalorder %s17, %s20
    %p26 = scmp.eq.s32.totalorder %s7, 0
    %p27 = por %p25, %p26
    %p28 = scmp.ne.s32.totalorder %s17, %s20
    %p29 = scmp.eq.s32.totalorder %s12, 1
    %p30 = por %p28, %p29
    %p31 = scmp.ne.s32.totalorder %s20, %s21
    %p32 = scmp.eq.s32.totalorder %s12, 0
    %p33 = por %p31, %p32
    %p34 = scmp.ne.s32.totalorder %s20, %s21
    %p35 = scmp.eq.s32.totalorder %s13, 1
    %p36 = por %p34, %p35
    %p38 = scmp.ne.s32.totalorder %s21, %s37
    %p39 = scmp.eq.s32.totalorder %s13, 0
    %p40 = por %p38, %p39
    %s41 = ssub.s32 %s7, %s14
    %p42 = scmp.eq.s32.totalorder %s41, 0
    %s44 = sadd.s32 %s43, 1
    %s45 = scalar_select %p42, %s43, %s44
    %p48 = pneg %p42
    %p49 = scmp.eq.s32.totalorder %s7, 1
    %p50 = por %p48, %p49
    %p51 = scmp.ne.s32.totalorder %s43, %s46
    %p52 = scmp.eq.s32.totalorder %s7, 0
    %p53 = por %p51, %p52
    %p54 = scmp.ne.s32.totalorder %s43, %s46
    %p55 = scmp.eq.s32.totalorder %s12, 1
    %p56 = por %p54, %p55
    %p57 = scmp.ne.s32.totalorder %s46, %s47
    %p58 = scmp.eq.s32.totalorder %s12, 0
    %p59 = por %p57, %p58
    %p60 = scmp.ne.s32.totalorder %s46, %s47
    %p61 = scmp.eq.s32.totalorder %s13, 1
    %p62 = por %p60, %p61
    %p64 = scmp.ne.s32.totalorder %s47, %s63
    %p65 = scmp.eq.s32.totalorder %s13, 0
    %p66 = por %p64, %p65
    %p67 = scmp.le.s32.totalorder 1, %s7
    %p68 = scmp.lt.s32.totalorder %s7, 3
    %p69 = pnand %p67, %p68
    %p70 = pneg %p69
    // Predicated region
    $region9: #{tpu_custom_call.1} parent=5 // pred_check
      _
    $region10: #{tpu_custom_call.1} parent=5 // pred_check_branch
      %72 = sbr.rel (%p69) target = $region12
    $region11: #{tpu_custom_call.1} parent=5 // pred_region
      %s73 = ssub.s32 %s7, 1
    $region12: #{tpu_custom_call.1} parent=5 // pred_fallthru
      _
    %p74 = scmp.lt.s32.totalorder %s7, 2
    // Predicated region
    $region13: #{tpu_custom_call.1} parent=5 // pred_check
      %p75 = pneg %p74
    $region14: #{tpu_custom_call.1} parent=5 // pred_check_branch
      %77 = sbr.rel (%p75) target = $region16
    $region15: #{tpu_custom_call.1} parent=5 // pred_region
      // Predicated region
      $region17: #{tpu_custom_call.1} parent=15 // pred_check
        %p78 = pneg %p27
      $region18: #{tpu_custom_call.1} parent=15 // pred_check_branch
        %80 = sbr.rel (%p78) target = $region20
      $region19: #{tpu_custom_call.1} parent=15 // pred_region
        %s81 = smul.u32 16, %s7
        %p82 = scmp.lt.s32.totalorder %s81, 31
        %s83 = scalar_select %p82, %s81, 31
        %s84 = smul.addr %s83, 8
        %s85 = scalar_lea.vmem %s0, %s84
        %s86 = smul.u32 16, %s7
      $region20: #{tpu_custom_call.1} parent=15 // pred_fallthru
        _
    $region16: #{tpu_custom_call.1} parent=5 // pred_fallthru
      _
    %p87 = scmp.le.s32.totalorder 1, %s7
    %p88 = scmp.lt.s32.totalorder %s7, 3
    %p89 = pnand %p87, %p88
    %p90 = pneg %p89
    // Predicated region
    $region21: #{tpu_custom_call.1} parent=5 // pred_check
      _
    $region22: #{tpu_custom_call.1} parent=5 // pred_check_branch
      %92 = sbr.rel (%p89) target = $region24
    $region23: #{tpu_custom_call.1} parent=5 // pred_region
      %s93 = ssub.s32 %s7, 1
      %s94 = smul.u32 16, %s12
      %p95 = scmp.lt.s32.totalorder %s94, 31
      %s96 = scalar_select %p95, %s94, 31
      %s97 = smul.addr %s96, 8
      %s98 = scalar_lea.vmem %s0, %s97
      %p99 = pneg %p33
      %p100 = pneg %p30
      %p101 = pneg %p59
      %p102 = pneg %p56
      %s103 = smul.u32 16, %s12
      %p104 = scmp.lt.s32.totalorder %s103, 31
      %s105 = scalar_select %p104, %s103, 31
      %s106 = smul.addr %s105, 8
      %s107 = scalar_lea.vmem %s1, %s106
      %s108 = smul.u32 16, %s12
      %p109 = scmp.lt.s32.totalorder %s108, 31
      %s110 = scalar_select %p109, %s108, 31
      %s111 = smul.addr %s110, 8
      %s112 = scalar_lea.vmem %s0, %s111
      %s113 = smul.u32 16, %s12
      %s114 = smul.u32 16, %s12
      %p115 = scmp.lt.s32.totalorder %s114, 31
      %s116 = scalar_select %p115, %s114, 31
      %s117 = smul.addr %s116, 8
      %s118 = scalar_lea.vmem %s1, %s117
      %s119 = smul.u32 16, %s12
      %v120 = vld [vmem:[%s112] sm:$0xff]
      %v121 = vld [vmem:[%s112 + $0x8] sm:$0xff]
      %v122 = vld [vmem:[%s112 + $0x10] sm:$0xff]
      %v123 = vld [vmem:[%s112 + $0x18] sm:$0xff]
      %v124 = vld [vmem:[%s112 + $0x20] sm:$0xff]
      %v125 = vld [vmem:[%s112 + $0x28] sm:$0xff]
      %v126 = vld [vmem:[%s112 + $0x30] sm:$0xff]
      %v127 = vld [vmem:[%s112 + $0x38] sm:$0xff]
      %v128 = vld [vmem:[%s112 + $0x40] sm:$0xff]
      %v129 = vld [vmem:[%s112 + $0x48] sm:$0xff]
      %v130 = vld [vmem:[%s112 + $0x50] sm:$0xff]
      %v131 = vld [vmem:[%s112 + $0x58] sm:$0xff]
      %v132 = vld [vmem:[%s112 + $0x60] sm:$0xff]
      %v133 = vld [vmem:[%s112 + $0x68] sm:$0xff]
      %v134 = vld [vmem:[%s112 + $0x70] sm:$0xff]
      %v135 = vld [vmem:[%s112 + $0x78] sm:$0xff]
      %v136 = vmul.f32 %v120, %v120
      %v137 = vmul.f32 %v121, %v121
      %v138 = vmul.f32 %v122, %v122
      %v139 = vmul.f32 %v123, %v123
      %v140 = vmul.f32 %v124, %v124
      %v141 = vmul.f32 %v125, %v125
      %v142 = vmul.f32 %v126, %v126
      %v143 = vmul.f32 %v127, %v127
      %v144 = vmul.f32 %v128, %v128
      %v145 = vmul.f32 %v129, %v129
      %v146 = vmul.f32 %v130, %v130
      %v147 = vmul.f32 %v131, %v131
      %v148 = vmul.f32 %v132, %v132
      %v149 = vmul.f32 %v133, %v133
      %v150 = vmul.f32 %v134, %v134
      %v151 = vmul.f32 %v135, %v135
      %vm152 = vcmask 523264
      %v153 = vsel %vm152, %v136, 0.0
      %154 = vadd.xlane.f32.xlu0 %v153
      %v155 = vpop.xlane.xlu0 %154
      %v156 = vsel %vm152, %v137, 0.0
      %157 = vadd.xlane.f32.xlu0 %v156
      %v158 = vpop.xlane.xlu0 %157
      %v159 = vsel %vm152, %v138, 0.0
      %160 = vadd.xlane.f32.xlu0 %v159
      %v161 = vpop.xlane.xlu0 %160
      %v162 = vsel %vm152, %v139, 0.0
      %163 = vadd.xlane.f32.xlu0 %v162
      %v164 = vpop.xlane.xlu0 %163
      %v165 = vsel %vm152, %v140, 0.0
      %166 = vadd.xlane.f32.xlu0 %v165
      %v167 = vpop.xlane.xlu0 %166
      %v168 = vsel %vm152, %v141, 0.0
      %169 = vadd.xlane.f32.xlu0 %v168
      %v170 = vpop.xlane.xlu0 %169
      %v171 = vsel %vm152, %v142, 0.0
      %172 = vadd.xlane.f32.xlu0 %v171
      %v173 = vpop.xlane.xlu0 %172
      %v174 = vsel %vm152, %v143, 0.0
      %175 = vadd.xlane.f32.xlu0 %v174
      %v176 = vpop.xlane.xlu0 %175
      %v177 = vsel %vm152, %v144, 0.0
      %178 = vadd.xlane.f32.xlu0 %v177
      %v179 = vpop.xlane.xlu0 %178
      %v180 = vsel %vm152, %v145, 0.0
      %181 = vadd.xlane.f32.xlu0 %v180
      %v182 = vpop.xlane.xlu0 %181
      %v183 = vsel %vm152, %v146, 0.0
      %184 = vadd.xlane.f32.xlu0 %v183
      %v185 = vpop.xlane.xlu0 %184
      %v186 = vsel %vm152, %v147, 0.0
      %187 = vadd.xlane.f32.xlu0 %v186
      %v188 = vpop.xlane.xlu0 %187
      %v189 = vsel %vm152, %v148, 0.0
      %190 = vadd.xlane.f32.xlu0 %v189
      %v191 = vpop.xlane.xlu0 %190
      %v192 = vsel %vm152, %v149, 0.0
      %193 = vadd.xlane.f32.xlu0 %v192
      %v194 = vpop.xlane.xlu0 %193
      %v195 = vsel %vm152, %v150, 0.0
      %196 = vadd.xlane.f32.xlu0 %v195
      %v197 = vpop.xlane.xlu0 %196
      %v198 = vsel %vm152, %v151, 0.0
      %199 = vadd.xlane.f32.xlu0 %v198
      %v200 = vpop.xlane.xlu0 %199
      %v201 = vmax.f32 %v155, 1e-24
      %v202 = vmax.f32 %v158, 1e-24
      %v203 = vmax.f32 %v161, 1e-24
      %v204 = vmax.f32 %v164, 1e-24
      %v205 = vmax.f32 %v167, 1e-24
      %v206 = vmax.f32 %v170, 1e-24
      %v207 = vmax.f32 %v173, 1e-24
      %v208 = vmax.f32 %v176, 1e-24
      %v209 = vmax.f32 %v179, 1e-24
      %v210 = vmax.f32 %v182, 1e-24
      %v211 = vmax.f32 %v185, 1e-24
      %v212 = vmax.f32 %v188, 1e-24
      %v213 = vmax.f32 %v191, 1e-24
      %v214 = vmax.f32 %v194, 1e-24
      %v215 = vmax.f32 %v197, 1e-24
      %v216 = vmax.f32 %v200, 1e-24
      %v217 = vrsqrt.pop %v201
      %v218 = vrsqrt.pop %v202
      %v219 = vrsqrt.pop %v203
      %v220 = vrsqrt.pop %v204
      %v221 = vrsqrt.pop %v205
      %v222 = vrsqrt.pop %v206
      %v223 = vrsqrt.pop %v207
      %v224 = vrsqrt.pop %v208
      %v225 = vrsqrt.pop %v209
      %v226 = vrsqrt.pop %v210
      %v227 = vrsqrt.pop %v211
      %v228 = vrsqrt.pop %v212
      %v229 = vrsqrt.pop %v213
      %v230 = vrsqrt.pop %v214
      %v231 = vrsqrt.pop %v215
      %v232 = vrsqrt.pop %v216
      %v233 = vmul.f32 %v120, %v217
      %v234 = vmul.f32 %v121, %v218
      %v235 = vmul.f32 %v122, %v219
      %v236 = vmul.f32 %v123, %v220
      %v237 = vmul.f32 %v124, %v221
      %v238 = vmul.f32 %v125, %v222
      %v239 = vmul.f32 %v126, %v223
      %v240 = vmul.f32 %v127, %v224
      %v241 = vmul.f32 %v128, %v225
      %v242 = vmul.f32 %v129, %v226
      %v243 = vmul.f32 %v130, %v227
      %v244 = vmul.f32 %v131, %v228
      %v245 = vmul.f32 %v132, %v229
      %v246 = vmul.f32 %v133, %v230
      %v247 = vmul.f32 %v134, %v231
      %v248 = vmul.f32 %v135, %v232
      %249 = vst.msk [vmem:[%s118] sm:$0xff] %vm152, %v233
      %250 = vst.msk [vmem:[%s118 + $0x8] sm:$0xff] %vm152, %v234
      %251 = vst.msk [vmem:[%s118 + $0x10] sm:$0xff] %vm152, %v235
      %252 = vst.msk [vmem:[%s118 + $0x18] sm:$0xff] %vm152, %v236
      %253 = vst.msk [vmem:[%s118 + $0x20] sm:$0xff] %vm152, %v237
      %254 = vst.msk [vmem:[%s118 + $0x28] sm:$0xff] %vm152, %v238
      %255 = vst.msk [vmem:[%s118 + $0x30] sm:$0xff] %vm152, %v239
      %256 = vst.msk [vmem:[%s118 + $0x38] sm:$0xff] %vm152, %v240
      %257 = vst.msk [vmem:[%s118 + $0x40] sm:$0xff] %vm152, %v241
      %258 = vst.msk [vmem:[%s118 + $0x48] sm:$0xff] %vm152, %v242
      %259 = vst.msk [vmem:[%s118 + $0x50] sm:$0xff] %vm152, %v243
      %260 = vst.msk [vmem:[%s118 + $0x58] sm:$0xff] %vm152, %v244
      %261 = vst.msk [vmem:[%s118 + $0x60] sm:$0xff] %vm152, %v245
      %262 = vst.msk [vmem:[%s118 + $0x68] sm:$0xff] %vm152, %v246
      %263 = vst.msk [vmem:[%s118 + $0x70] sm:$0xff] %vm152, %v247
      %264 = vst.msk [vmem:[%s118 + $0x78] sm:$0xff] %vm152, %v248
      %s265 = smul.u32 16, %s12
      %p266 = scmp.lt.s32.totalorder %s265, 31
      %s267 = scalar_select %p266, %s265, 31
      %s268 = smul.addr %s267, 8
      %s269 = scalar_lea.vmem %s1, %s268
      // Predicated region
      $region25: #{tpu_custom_call.1} parent=23 // pred_check
        %p270 = pneg %p56
      $region26: #{tpu_custom_call.1} parent=23 // pred_check_branch
        %272 = sbr.rel (%p270) target = $region28
      $region27: #{tpu_custom_call.1} parent=23 // pred_region
        %s273 = smul.u32 16, %s12
      $region28: #{tpu_custom_call.1} parent=23 // pred_fallthru
        _
    $region24: #{tpu_custom_call.1} parent=5 // pred_fallthru
      _
    %p274 = scmp.le.s32.totalorder 2, %s7
    // Predicated region
    $region29: #{tpu_custom_call.1} parent=5 // pred_check
      %p275 = pneg %p274
    $region30: #{tpu_custom_call.1} parent=5 // pred_check_branch
      %277 = sbr.rel (%p275) target = $region32
    $region31: #{tpu_custom_call.1} parent=5 // pred_region
      %s278 = ssub.s32 %s7, 2
      // Predicated region
      $region33: #{tpu_custom_call.1} parent=31 // pred_check
        %p279 = pneg %p62
      $region34: #{tpu_custom_call.1} parent=31 // pred_check_branch
        %281 = sbr.rel (%p279) target = $region36
      $region35: #{tpu_custom_call.1} parent=31 // pred_region
        %s282 = smul.u32 16, %s13
        %p283 = scmp.lt.s32.totalorder %s282, 31
        %s284 = scalar_select %p283, %s282, 31
        %s285 = smul.addr %s284, 8
        %s286 = scalar_lea.vmem %s1, %s285
      $region36: #{tpu_custom_call.1} parent=31 // pred_fallthru
        _
    $region32: #{tpu_custom_call.1} parent=5 // pred_fallthru
      _
  $region6: #{tpu_custom_call.1} parent=0 // loop_footer
    %s11 = sadd.s32 1, %s7
  $region7: #{tpu_custom_call.1} parent=0 // loop_footer_branch
    %6 = sbr.rel target = $region3
  $region8: #{tpu_custom_call.1} parent=0 // loop_exit
    _

</llo_original>
